<compile_context>
chip_gen: v6e
topology: v6e:2x2x1
jax: 0.10.0
libtpu: 0.0.40
codegen_flags: <defaults>
</compile_context>

<pallas_src>
import jax
import jax.numpy as jnp
from jax import lax
from jax.experimental import pallas as pl
from jax.experimental.pallas import tpu as pltpu


def prompt_projection_kernel(x_ref, w_ref, b_ref, o_ref):
    # x_ref: [bm, K] f32   (CLIP text embeddings tile)
    # w_ref: [D, K]  f32   (PyTorch nn.Linear.weight layout, resident block)
    # b_ref: [1, D]  f32
    # o_ref: [bm, 1, D] f32
    #
    # Cast to bf16 in-kernel (VPU, free slot); contract K (axis 1 of x) with
    # K (axis 1 of w): out[bm, D] = x @ w.T.  Accumulate + bias-add in f32.
    xb = x_ref[...].astype(jnp.bfloat16)
    wb = w_ref[...].astype(jnp.bfloat16)
    acc = lax.dot_general(
        xb, wb,
        dimension_numbers=(((1,), (1,)), ((), ())),
        preferred_element_type=jnp.float32,
    )                                        # [bm, D] f32
    y = acc + b_ref[...]                     # bias broadcasts over rows
    o_ref[...] = y[:, None, :]               # [bm, 1, D] — unsqueeze in-kernel


def text_prompt_encoder_forward(text_embeddings, weight, bias):
    """Pallas equivalent of:
         y = self.prompt_projection(text_embeddings.float()).unsqueeze(1)

    Args:
      text_embeddings: [B, 512] float32 (CLIP encode_text output)
      weight:          [D, 512] float32 (PyTorch nn.Linear.weight layout)
      bias:            [D]      float32
    Returns:
      [B, 1, D] float32
    """
    B, K = text_embeddings.shape
    D = weight.shape[0]

    x = text_embeddings.astype(jnp.float32)          # no bf16 convert pass
    w = weight.astype(jnp.float32)                   # no transpose / convert
    b2d = bias.astype(jnp.float32).reshape(1, D)     # [1, D] (1 KB, trivial)

    # Single block for small B (grid of 1, zero extra step overhead).
    # If B ever grows past 1024, tile the batch in 1024-row blocks so
    # per-step overhead amortizes and v7x's 2 TCs can shard rows.
    bm = B if B <= 1024 else 1024
    grid = (pl.cdiv(B, bm),)

    cost = pl.CostEstimate(
        flops=2 * B * K * D,
        transcendentals=0,
        bytes_accessed=(B * K * 4) + (D * K * 4) + (D * 4) + (B * D * 4),
    )

    out = pl.pallas_call(
        prompt_projection_kernel,
        out_shape=jax.ShapeDtypeStruct((B, 1, D), jnp.float32),
        grid=grid,
        in_specs=[
            pl.BlockSpec((bm, K), lambda i: (i, 0)),     # batch tile of x
            pl.BlockSpec((D, K), lambda i: (0, 0)),      # weight resident
            pl.BlockSpec((1, D), lambda i: (0, 0)),      # bias resident
        ],
        out_specs=pl.BlockSpec((bm, 1, D), lambda i: (i, 0, 0)),
        compiler_params=pltpu.CompilerParams(
            dimension_semantics=("parallel",)),
        cost_estimate=cost,
    )(x, w, b2d)

    return out  # already [B, 1, D]


if __name__ == "__main__":
    B = 2                  # number of text prompts
    K = 512                # CLIP text-embedding width (fixed by Linear(512, .))
    D = 256                # prompt_embed_dim

    key = jax.random.PRNGKey(0)
    k_x, k_w, k_b = jax.random.split(key, 3)

    # Stand-in for clip_model.encode_text(clip.tokenize(prompts)).float()
    text_embeddings = jax.random.normal(k_x, (B, K), dtype=jnp.float32)

    # Deterministic nn.Linear(512, D) parameters (PyTorch layout: W [D, K], b [D])
    weight = jax.random.normal(k_w, (D, K), dtype=jnp.float32) * 0.02
    bias = jax.random.normal(k_b, (D,), dtype=jnp.float32) * 0.02

    y = text_prompt_encoder_forward(text_embeddings, weight, bias)
    y = jax.block_until_ready(y)
    assert y.shape == (B, 1, D), y.shape

    # Tight check against a reference using the same bf16-rounded operands
    # (bf16 products are exact in f32; only accumulation order differs).
    xf = text_embeddings.astype(jnp.bfloat16).astype(jnp.float32)
    wf = weight.astype(jnp.bfloat16).astype(jnp.float32)
    ref_bf16 = (xf @ wf.T + bias)[:, None, :]
    assert jnp.allclose(y, ref_bf16, atol=2e-3, rtol=2e-3)

    # Loose sanity check against the original full-f32 nn.Linear math.
    ref_f32 = (text_embeddings @ weight.T + bias)[:, None, :]
    assert jnp.allclose(y, ref_f32, atol=5e-2, rtol=5e-2)

    print("KERNEL_OK")
</pallas_src>

<mosaic_0001>
module attributes {stable_mosaic.version = 11 : i64} {
  func.func @prompt_projection_kernel(%arg0: i32, %arg1: memref<2x512xf32, #tpu.memory_space<vmem>>, %arg2: memref<256x512xf32, #tpu.memory_space<vmem>>, %arg3: memref<1x256xf32, #tpu.memory_space<vmem>>, %arg4: memref<2x1x256xf32, #tpu.memory_space<vmem>>) attributes {dimension_semantics = [#tpu.dimension_semantics<parallel>], iteration_bounds = array<i64: 1>, scalar_prefetch = 0 : i64, scratch_operands = 0 : i64, tpu.core_type = #tpu.core_type<tc>, window_params = [{transform_indices = @transform_0, window_bounds = array<i64: 2, 512>}, {pipeline_mode = #tpu.pipeline_mode<synchronous>, transform_indices = @transform_1, window_bounds = array<i64: 256, 512>}, {pipeline_mode = #tpu.pipeline_mode<synchronous>, transform_indices = @transform_2, window_bounds = array<i64: 1, 256>}, {transform_indices = @transform_3, window_bounds = array<i64: 2, 1, 256>}]} {
    %c0 = arith.constant 0 : index
    %c0_0 = arith.constant 0 : index
    %0 = vector.load %arg1[%c0, %c0_0] : memref<2x512xf32, #tpu.memory_space<vmem>>, vector<2x512xf32>
    %1 = arith.truncf %0 : vector<2x512xf32> to vector<2x512xbf16>
    %c0_1 = arith.constant 0 : index
    %c0_2 = arith.constant 0 : index
    %2 = vector.load %arg2[%c0_1, %c0_2] : memref<256x512xf32, #tpu.memory_space<vmem>>, vector<256x512xf32>
    %3 = arith.truncf %2 : vector<256x512xf32> to vector<256x512xbf16>
    %cst = arith.constant dense<0.000000e+00> : vector<2x256xf32>
    %4 = tpu.matmul %1, %3, %cst {dimension_numbers = #tpu.dot_dimension_numbers<[1], [1], [0], [0], [0, 0, 1, 0], [], []>} : vector<2x512xbf16>, vector<256x512xbf16>, vector<2x256xf32> -> vector<2x256xf32>
    %c0_3 = arith.constant 0 : index
    %c0_4 = arith.constant 0 : index
    %5 = vector.load %arg3[%c0_3, %c0_4] : memref<1x256xf32, #tpu.memory_space<vmem>>, vector<1x256xf32>
    %6 = vector.broadcast %5 : vector<1x256xf32> to vector<2x256xf32>
    %7 = arith.addf %4, %6 : vector<2x256xf32>
    %8 = vector.shape_cast %7 : vector<2x256xf32> to vector<2x1x256xf32>
    %c0_5 = arith.constant 0 : index
    %c0_6 = arith.constant 0 : index
    %c0_7 = arith.constant 0 : index
    %9 = vector.load %arg4[%c0_5, %c0_6, %c0_7] : memref<2x1x256xf32, #tpu.memory_space<vmem>>, vector<2x1x256xf32>
    tpu.vector_store %arg4[%c0_5, %c0_6, %c0_7], %8 {strides = array<i32>} : memref<2x1x256xf32, #tpu.memory_space<vmem>>, vector<2x1x256xf32>,
    return
  }
  func.func @transform_0(%arg0: i32) -> (i32, i32) {
    %c0_i32 = arith.constant 0 : i32
    %c0_i32_0 = arith.constant 0 : i32
    return %arg0, %c0_i32 : i32, i32
  }
  func.func @transform_1(%arg0: i32) -> (i32, i32) {
    %c0_i32 = arith.constant 0 : i32
    %c0_i32_0 = arith.constant 0 : i32
    %c0_i32_1 = arith.constant 0 : i32
    return %c0_i32, %c0_i32_0 : i32, i32
  }
  func.func @transform_2(%arg0: i32) -> (i32, i32) {
    %c0_i32 = arith.constant 0 : i32
    %c0_i32_0 = arith.constant 0 : i32
    %c0_i32_1 = arith.constant 0 : i32
    return %c0_i32, %c0_i32_0 : i32, i32
  }
  func.func @transform_3(%arg0: i32) -> (i32, i32, i32) {
    %c0_i32 = arith.constant 0 : i32
    %c0_i32_0 = arith.constant 0 : i32
    %c0_i32_1 = arith.constant 0 : i32
    return %arg0, %c0_i32, %c0_i32_0 : i32, i32, i32
  }
}

</mosaic_0001>

<llo_original>
// kernel: tpu_custom_call.1
$region0: #{tpu_custom_call.1}
  #allocation0 [shape = 'u32[]', space=smem, size = 0x4, offset = 0x4, fixed_abs, tag = 'smem constant byte address 0x4 - core index']
  #allocation1 [shape = 'u32[144,128]{1,0:T(1,128)}', space=vmem, size = 0x12000, scoped, tag = 'internal scratch']
  %s0 = inlined_call_operand.hbm [shape: f32[2,512], index: 0, kind: input, shape index: {}]
  %s1 = inlined_call_operand.hbm [shape: f32[256,512], index: 1, kind: input, shape index: {}]
  %s2 = inlined_call_operand.vmem [shape: f32[1,256], index: 2, kind: input, shape index: {}]
  %s3 = inlined_call_operand.hbm [shape: f32[2,1,256], index: 3, kind: output, shape index: {}]
  %s4 = sld [smem:[#allocation0]]
  $region30: #{tpu_custom_call.1} parent=0
    _
  %s6 = ssub.s32 1, %s4
  %s7 = scalar_select 0, %s6, %s4
  $region1: #{tpu_custom_call.1} parent=0
    #allocation2 [shape = 'u8[4096]{0}', space=vmem, size = 0x1000, scoped, tag = 'input window, operand 0, single buffered']
    #allocation3 [shape = 's32[1]{0}', space=sflag, size = 0x4, scoped, tag = 'scoped memory for tpu_custom_call.1']
    #allocation4 [shape = 's32[1]{0}', space=sflag, size = 0x4, scoped, tag = 'scoped memory for tpu_custom_call.1']
    #allocation5 [shape = 'u8[524288]{0}', space=vmem, size = 0x80000, scoped, tag = 'input window, operand 1, single buffered']
    #allocation6 [shape = 's32[1]{0}', space=sflag, size = 0x4, scoped, tag = 'scoped memory for tpu_custom_call.1']
    #allocation7 [shape = 'u8[2048]{0}', space=vmem, size = 0x800, scoped, tag = 'output window, operand 0, single buffered']
    %8 = vsyncpa [#allocation3], 0
    %9 = vsyncpa [#allocation6], 0
    %10 = vsyncpa [#allocation4], 0
    // Predicated region
    $region2: #{tpu_custom_call.1} parent=1 // pred_check
      _
    $region3: #{tpu_custom_call.1} parent=1 // pred_check_branch
      %12 = sbr.rel (0) target = $region5
    $region4: #{tpu_custom_call.1} parent=1 // pred_region
      %s14 = ssub.s32 128, 128
      %15 = vsyncadd [#allocation3], %s14
      %s17 = sshll.u32 [#allocation2], 4
      %s18 = int_to_ptr.vmem [resolvable:$true] %s17
      %20 = dma.hbm_to_vmem [thread:$0]  %s0, 128, %s18, [#allocation3]
    $region5: #{tpu_custom_call.1} parent=1 // pred_fallthru
      _
    // Predicated region
    $region6: #{tpu_custom_call.1} parent=1 // pred_check
      _
    $region7: #{tpu_custom_call.1} parent=1 // pred_check_branch
      %22 = sbr.rel (0) target = $region9
    $region8: #{tpu_custom_call.1} parent=1 // pred_region
      %s24 = ssub.s32 16384, 16384
      %25 = vsyncadd [#allocation6], %s24
      %s26 = sshll.u32 [#allocation5], 4
      %s27 = int_to_ptr.vmem [resolvable:$true] %s26
      %32 = dma.hbm_to_vmem [thread:$0]  %s1, 16384, %s27, [#allocation6], 512, 512, 32
    $region9: #{tpu_custom_call.1} parent=1 // pred_fallthru
      _
    // Predicated region
    $region10: #{tpu_custom_call.1} parent=1 // pred_check
      _
    $region11: #{tpu_custom_call.1} parent=1 // pred_check_branch
      %34 = sbr.rel (0) target = $region13
    $region12: #{tpu_custom_call.1} parent=1 // pred_region
      _
    $region13: #{tpu_custom_call.1} parent=1 // pred_fallthru
      _
    // Predicated region
    $region14: #{tpu_custom_call.1} parent=1 // pred_check
      _
    $region15: #{tpu_custom_call.1} parent=1 // pred_check_branch
      %36 = sbr.rel (0) target = $region17
    $region16: #{tpu_custom_call.1} parent=1 // pred_region
      %37 = dma.done [#allocation3], 128
    $region17: #{tpu_custom_call.1} parent=1 // pred_fallthru
      _
    // Predicated region
    $region18: #{tpu_custom_call.1} parent=1 // pred_check
      _
    $region19: #{tpu_custom_call.1} parent=1 // pred_check_branch
      %39 = sbr.rel (0) target = $region21
    $region20: #{tpu_custom_call.1} parent=1 // pred_region
      %40 = dma.done [#allocation6], 16384
    $region21: #{tpu_custom_call.1} parent=1 // pred_fallthru
      _
    %v41 = vld [vmem:[#allocation2] sm:$0xff]
    %v43 = vcombine.high %v41, %v41
    %v45 = vunpack.c.l.s4 1983009808
    %v46 = vunpack.c.0.s8 %v45
    %v47 = vlaneseq
    %v48 = vshrl.u32 %v47, 7
    %v49 = vsub.s32 %v46, %v48
    %v50 = vrot.slane %v41, %v49
    %v52 = vunpack.c.l.s4 1983009808
    %v53 = vunpack.c.0.s8 %v52
    %v54 = vlaneseq
    %v55 = vshrl.u32 %v54, 7
    %v56 = vsub.s32 %v53, %v55
    %v57 = vrot.slane %v43, %v56
    %v58 = vcombine.high %v50, %v50
    %v59 = vcombine.high %v57, %v57
    %v64 = vpack.c.bf16 %v50, %v50
    %v65 = vpack.c.bf16 %v58, %v58
    %v66 = vpack.c.bf16 %v57, %v57
    %v67 = vpack.c.bf16 %v59, %v59
    %v68 = vld [vmem:[#allocation5] sm:$0xff]
    %v69 = vld [vmem:[#allocation5 + $0x8] sm:$0xff]
    %v70 = vld [vmem:[#allocation5 + $0x10] sm:$0xff]
    %v71 = vld [vmem:[#allocation5 + $0x18] sm:$0xff]
    %v72 = vld [vmem:[#allocation5 + $0x20] sm:$0xff]
    %v73 = vld [vmem:[#allocation5 + $0x28] sm:$0xff]
    %v74 = vld [vmem:[#allocation5 + $0x30] sm:$0xff]
    %v75 = vld [vmem:[#allocation5 + $0x38] sm:$0xff]
    %v76 = vld [vmem:[#allocation5 + $0x40] sm:$0xff]
    %v77 = vld [vmem:[#allocation5 + $0x48] sm:$0xff]
    %v78 = vld [vmem:[#allocation5 + $0x50] sm:$0xff]
    %v79 = vld [vmem:[#allocation5 + $0x58] sm:$0xff]
    %v80 = vld [vmem:[#allocation5 + $0x60] sm:$0xff]
    %v81 = vld [vmem:[#allocation5 + $0x68] sm:$0xff]
    %v82 = vld [vmem:[#allocation5 + $0x70] sm:$0xff]
    %v83 = vld [vmem:[#allocation5 + $0x78] sm:$0xff]
    %v84 = vld [vmem:[#allocation5 + $0x80] sm:$0xff]
    %v85 = vld [vmem:[#allocation5 + $0x88] sm:$0xff]
    %v86 = vld [vmem:[#allocation5 + $0x90] sm:$0xff]
    %v87 = vld [vmem:[#allocation5 + $0x98] sm:$0xff]
    %v88 = vld [vmem:[#allocation5 + $0xa0] sm:$0xff]
    %v89 = vld [vmem:[#allocation5 + $0xa8] sm:$0xff]
    %v90 = vld [vmem:[#allocation5 + $0xb0] sm:$0xff]
    %v91 = vld [vmem:[#allocation5 + $0xb8] sm:$0xff]
    %v92 = vld [vmem:[#allocation5 + $0xc0] sm:$0xff]
    %v93 = vld [vmem:[#allocation5 + $0xc8] sm:$0xff]
    %v94 = vld [vmem:[#allocation5 + $0xd0] sm:$0xff]
    %v95 = vld [vmem:[#allocation5 + $0xd8] sm:$0xff]
    %v96 = vld [vmem:[#allocation5 + $0xe0] sm:$0xff]
    %v97 = vld [vmem:[#allocation5 + $0xe8] sm:$0xff]
    %v98 = vld [vmem:[#allocation5 + $0xf0] sm:$0xff]
    %v99 = vld [vmem:[#allocation5 + $0xf8] sm:$0xff]
    %v100 = vld [vmem:[#allocation5 + $0x100] sm:$0xff]
    %v101 = vld [vmem:[#allocation5 + $0x108] sm:$0xff]
    %v102 = vld [vmem:[#allocation5 + $0x110] sm:$0xff]
    %v103 = vld [vmem:[#allocation5 + $0x118] sm:$0xff]
    %v104 = vld [vmem:[#allocation5 + $0x120] sm:$0xff]
    %v105 = vld [vmem:[#allocation5 + $0x128] sm:$0xff]
    %v106 = vld [vmem:[#allocation5 + $0x130] sm:$0xff]
    %v107 = vld [vmem:[#allocation5 + $0x138] sm:$0xff]
    %v108 = vld [vmem:[#allocation5 + $0x140] sm:$0xff]
    %v109 = vld [vmem:[#allocation5 + $0x148] sm:$0xff]
    %v110 = vld [vmem:[#allocation5 + $0x150] sm:$0xff]
    %v111 = vld [vmem:[#allocation5 + $0x158] sm:$0xff]
    %v112 = vld [vmem:[#allocation5 + $0x160] sm:$0xff]
    %v113 = vld [vmem:[#allocation5 + $0x168] sm:$0xff]
    %v114 = vld [vmem:[#allocation5 + $0x170] sm:$0xff]
    %v115 = vld [vmem:[#allocation5 + $0x178] sm:$0xff]
    %v116 = vld [vmem:[#allocation5 + $0x180] sm:$0xff]
    %v117 = vld [vmem:[#allocation5 + $0x188] sm:$0xff]
    %v118 = vld [vmem:[#allocation5 + $0x190] sm:$0xff]
    %v119 = vld [vmem:[#allocation5 + $0x198] sm:$0xff]
    %v120 = vld [vmem:[#allocation5 + $0x1a0] sm:$0xff]
    %v121 = vld [vmem:[#allocation5 + $0x1a8] sm:$0xff]
    %v122 = vld [vmem:[#allocation5 + $0x1b0] sm:$0xff]
    %v123 = vld [vmem:[#allocation5 + $0x1b8] sm:$0xff]
    %v124 = vld [vmem:[#allocation5 + $0x1c0] sm:$0xff]
    %v125 = vld [vmem:[#allocation5 + $0x1c8] sm:$0xff]
    %v126 = vld [vmem:[#allocation5 + $0x1d0] sm:$0xff]
    %v127 = vld [vmem:[#allocation5 + $0x1d8] sm:$0xff]
    %v128 = vld [vmem:[#allocation5 + $0x1e0] sm:$0xff]
    %v129 = vld [vmem:[#allocation5 + $0x1e8] sm:$0xff]
    %v130 = vld [vmem:[#allocation5 + $0x1f0] sm:$0xff]
    %v131 = vld [vmem:[#allocation5 + $0x1f8] sm:$0xff]
    %v132 = vld [vmem:[#allocation5 + $0x200] sm:$0xff]
    %v133 = vld [vmem:[#allocation5 + $0x208] sm:$0xff]
    %v134 = vld [vmem:[#allocation5 + $0x210] sm:$0xff]
    %v135 = vld [vmem:[#allocation5 + $0x218] sm:$0xff]
    %v136 = vld [vmem:[#allocation5 + $0x220] sm:$0xff]
    %v137 = vld [vmem:[#allocation5 + $0x228] sm:$0xff]
    %v138 = vld [vmem:[#allocation5 + $0x230] sm:$0xff]
    %v139 = vld [vmem:[#allocation5 + $0x238] sm:$0xff]
    %v140 = vld [vmem:[#allocation5 + $0x240] sm:$0xff]
    %v141 = vld [vmem:[#allocation5 + $0x248] sm:$0xff]
    %v142 = vld [vmem:[#allocation5 + $0x250] sm:$0xff]
    %v143 = vld [vmem:[#allocation5 + $0x258] sm:$0xff]
    %v144 = vld [vmem:[#allocation5 + $0x260] sm:$0xff]
    %v145 = vld [vmem:[#allocation5 + $0x268] sm:$0xff]
    %v146 = vld [vmem:[#allocation5 + $0x270] sm:$0xff]
    %v147 = vld [vmem:[#allocation5 + $0x278] sm:$0xff]
    %v148 = vld [vmem:[#allocation5 + $0x280] sm:$0xff]
    %v149 = vld [vmem:[#allocation5 + $0x288] sm:$0xff]
    %v150 = vld [vmem:[#allocation5 + $0x290] sm:$0xff]
    %v151 = vld [vmem:[#allocation5 + $0x298] sm:$0xff]
    %v152 = vld [vmem:[#allocation5 + $0x2a0] sm:$0xff]
    %v153 = vld [vmem:[#allocation5 + $0x2a8] sm:$0xff]
    %v154 = vld [vmem:[#allocation5 + $0x2b0] sm:$0xff]
    %v155 = vld [vmem:[#allocation5 + $0x2b8] sm:$0xff]
    %v156 = vld [vmem:[#allocation5 + $0x2c0] sm:$0xff]
    %v157 = vld [vmem:[#allocation5 + $0x2c8] sm:$0xff]
    %v158 = vld [vmem:[#allocation5 + $0x2d0] sm:$0xff]
    %v159 = vld [vmem:[#allocation5 + $0x2d8] sm:$0xff]
    %v160 = vld [vmem:[#allocation5 + $0x2e0] sm:$0xff]
    %v161 = vld [vmem:[#allocation5 + $0x2e8] sm:$0xff]
    %v162 = vld [vmem:[#allocation5 + $0x2f0] sm:$0xff]
    %v163 = vld [vmem:[#allocation5 + $0x2f8] sm:$0xff]
    %v164 = vld [vmem:[#allocation5 + $0x300] sm:$0xff]
    %v165 = vld [vmem:[#allocation5 + $0x308] sm:$0xff]
    %v166 = vld [vmem:[#allocation5 + $0x310] sm:$0xff]
    %v167 = vld [vmem:[#allocation5 + $0x318] sm:$0xff]
    %v168 = vld [vmem:[#allocation5 + $0x320] sm:$0xff]
    %v169 = vld [vmem:[#allocation5 + $0x328] sm:$0xff]
    %v170 = vld [vmem:[#allocation5 + $0x330] sm:$0xff]
    %v171 = vld [vmem:[#allocation5 + $0x338] sm:$0xff]
    %v172 = vld [vmem:[#allocation5 + $0x340] sm:$0xff]
    %v173 = vld [vmem:[#allocation5 + $0x348] sm:$0xff]
    %v174 = vld [vmem:[#allocation5 + $0x350] sm:$0xff]
    %v175 = vld [vmem:[#allocation5 + $0x358] sm:$0xff]
    %v176 = vld [vmem:[#allocation5 + $0x360] sm:$0xff]
    %v177 = vld [vmem:[#allocation5 + $0x368] sm:$0xff]
    %v178 = vld [vmem:[#allocation5 + $0x370] sm:$0xff]
    %v179 = vld [vmem:[#allocation5 + $0x378] sm:$0xff]
    %v180 = vld [vmem:[#allocation5 + $0x380] sm:$0xff]
    %v181 = vld [vmem:[#allocation5 + $0x388] sm:$0xff]
    %v182 = vld [vmem:[#allocation5 + $0x390] sm:$0xff]
    %v183 = vld [vmem:[#allocation5 + $0x398] sm:$0xff]
    %v184 = vld [vmem:[#allocation5 + $0x3a0] sm:$0xff]
    %v185 = vld [vmem:[#allocation5 + $0x3a8] sm:$0xff]
    %v186 = vld [vmem:[#allocation5 + $0x3b0] sm:$0xff]
    %v187 = vld [vmem:[#allocation5 + $0x3b8] sm:$0xff]
    %v188 = vld [vmem:[#allocation5 + $0x3c0] sm:$0xff]
    %v189 = vld [vmem:[#allocation5 + $0x3c8] sm:$0xff]
    %v190 = vld [vmem:[#allocation5 + $0x3d0] sm:$0xff]
    %v191 = vld [vmem:[#allocation5 + $0x3d8] sm:$0xff]
    %v192 = vld [vmem:[#allocation5 + $0x3e0] sm:$0xff]
    %v193 = vld [vmem:[#allocation5 + $0x3e8] sm:$0xff]
    %v194 = vld [vmem:[#allocation5 + $0x3f0] sm:$0xff]
    %v195 = vld [vmem:[#allocation5 + $0x3f8] sm:$0xff]
    %v196 = vpack.c.bf16 %v72, %v68
    %v197 = vpack.c.bf16 %v73, %v69
    %v198 = vpack.c.bf16 %v74, %v70
    %v199 = vpack.c.bf16 %v75, %v71
    %v200 = vpack.c.bf16 %v80, %v76
    %v201 = vpack.c.bf16 %v81, %v77
    %v202 = vpack.c.bf16 %v82, %v78
    %v203 = vpack.c.bf16 %v83, %v79
    %v204 = vpack.c.bf16 %v88, %v84
    %v205 = vpack.c.bf16 %v89, %v85
    %v206 = vpack.c.bf16 %v90, %v86
    %v207 = vpack.c.bf16 %v91, %v87
    %v208 = vpack.c.bf16 %v96, %v92
    %v209 = vpack.c.bf16 %v97, %v93
    %v210 = vpack.c.bf16 %v98, %v94
    %v211 = vpack.c.bf16 %v99, %v95
    %v212 = vpack.c.bf16 %v104, %v100
    %v213 = vpack.c.bf16 %v105, %v101
    %v214 = vpack.c.bf16 %v106, %v102
    %v215 = vpack.c.bf16 %v107, %v103
    %v216 = vpack.c.bf16 %v112, %v108
    %v217 = vpack.c.bf16 %v113, %v109
    %v218 = vpack.c.bf16 %v114, %v110
    %v219 = vpack.c.bf16 %v115, %v111
    %v220 = vpack.c.bf16 %v120, %v116
    %v221 = vpack.c.bf16 %v121, %v117
    %v222 = vpack.c.bf16 %v122, %v118
    %v223 = vpack.c.bf16 %v123, %v119
    %v224 = vpack.c.bf16 %v128, %v124
    %v225 = vpack.c.bf16 %v129, %v125
    %v226 = vpack.c.bf16 %v130, %v126
    %v227 = vpack.c.bf16 %v131, %v127
    %v228 = vpack.c.bf16 %v136, %v132
    %v229 = vpack.c.bf16 %v137, %v133
    %v230 = vpack.c.bf16 %v138, %v134
    %v231 = vpack.c.bf16 %v139, %v135
    %v232 = vpack.c.bf16 %v144, %v140
    %v233 = vpack.c.bf16 %v145, %v141
    %v234 = vpack.c.bf16 %v146, %v142
    %v235 = vpack.c.bf16 %v147, %v143
    %v236 = vpack.c.bf16 %v152, %v148
    %v237 = vpack.c.bf16 %v153, %v149
    %v238 = vpack.c.bf16 %v154, %v150
    %v239 = vpack.c.bf16 %v155, %v151
    %v240 = vpack.c.bf16 %v160, %v156
    %v241 = vpack.c.bf16 %v161, %v157
    %v242 = vpack.c.bf16 %v162, %v158
    %v243 = vpack.c.bf16 %v163, %v159
    %v244 = vpack.c.bf16 %v168, %v164
    %v245 = vpack.c.bf16 %v169, %v165
    %v246 = vpack.c.bf16 %v170, %v166
    %v247 = vpack.c.bf16 %v171, %v167
    %v248 = vpack.c.bf16 %v176, %v172
    %v249 = vpack.c.bf16 %v177, %v173
    %v250 = vpack.c.bf16 %v178, %v174
    %v251 = vpack.c.bf16 %v179, %v175
    %v252 = vpack.c.bf16 %v184, %v180
    %v253 = vpack.c.bf16 %v185, %v181
    %v254 = vpack.c.bf16 %v186, %v182
    %v255 = vpack.c.bf16 %v187, %v183
    %v256 = vpack.c.bf16 %v192, %v188
    %v257 = vpack.c.bf16 %v193, %v189
    %v258 = vpack.c.bf16 %v194, %v190
    %v259 = vpack.c.bf16 %v195, %v191
    %v260 = vld [vmem:[%s2] sm:$0x3]
    %v262 = vlaneseq
    %v263 = vshrl.u32 %v262, 7
    %v264 = vsub.s32 0, %v263
    %v265 = vrot.slane %v260, %v264
    %v266 = vlaneseq
    %v267 = vshrl.u32 %v266, 7
    %v268 = vsub.s32 1, %v267
    %v269 = vrot.slane %v260, %v268
    %272 = vmatprep.subr.bf16.mxu0 %v225
    %273 = vmatpush1.bf16.xpose.msra.mxu0 %v224
    %274 = vmatprep.subr.bf16.mxu0 %v221
    %275 = vmatpush1.bf16.xpose.msra.mxu0 %v220
    %276 = vmatprep.subr.bf16.mxu0 %v217
    %277 = vmatpush1.bf16.xpose.msra.mxu0 %v216
    %278 = vmatprep.subr.bf16.mxu0 %v213
    %279 = vmatpush1.bf16.xpose.msra.mxu0 %v212
    %280 = vmatprep.subr.bf16.mxu0 %v209
    %281 = vmatpush1.bf16.xpose.msra.mxu0 %v208
    %282 = vmatprep.subr.bf16.mxu0 %v205
    %283 = vmatpush1.bf16.xpose.msra.mxu0 %v204
    %284 = vmatprep.subr.bf16.mxu0 %v201
    %285 = vmatpush1.bf16.xpose.msra.mxu0 %v200
    %286 = vmatprep.subr.bf16.mxu0 %v197
    %287 = vmatpush1.bf16.xpose.msra.mxu0 %v196
    %288 = vmatprep.subr.bf16.mxu0 %v257
    %289 = vmatpush2.bf16.xpose.msra.mxu0 %v256
    %290 = vmatprep.subr.bf16.mxu0 %v253
    %291 = vmatpush2.bf16.xpose.msra.mxu0 %v252
    %292 = vmatprep.subr.bf16.mxu0 %v249
    %293 = vmatpush2.bf16.xpose.msra.mxu0 %v248
    %294 = vmatprep.subr.bf16.mxu0 %v245
    %295 = vmatpush2.bf16.xpose.msra.mxu0 %v244
    %296 = vmatprep.subr.bf16.mxu0 %v241
    %297 = vmatpush2.bf16.xpose.msra.mxu0 %v240
    %298 = vmatprep.subr.bf16.mxu0 %v237
    %299 = vmatpush2.bf16.xpose.msra.mxu0 %v236
    %300 = vmatprep.subr.bf16.mxu0 %v233
    %301 = vmatpush2.bf16.xpose.msra.mxu0 %v232
    %302 = vmatprep.subr.bf16.mxu0 %v229
    %303 = vmatpush2.bf16.xpose.msra.mxu0 %v228
    %304 = vmatprep.mubr.bf16.mxu0 %v65
    %305 = vmatmul.mubr.bf16.gmra.mxu0 %v64
    %v306 = vpop.f32.mrf.mxu0
    %v307 = vadd.f32 %v265, %v306
    %v308 = vpop.f32.mrf.mxu0
    %v309 = vadd.f32 %v269, %v308
    %v310 = vpop.f32.mrf.mxu0
    %v311 = vpop.f32.mrf.mxu0
    %312 = vdwg.mxu0
    %313 = vmatprep.subr.bf16.mxu0 %v227
    %314 = vmatpush1.bf16.xpose.msra.mxu0 %v226
    %315 = vmatprep.subr.bf16.mxu0 %v223
    %316 = vmatpush1.bf16.xpose.msra.mxu0 %v222
    %317 = vmatprep.subr.bf16.mxu0 %v219
    %318 = vmatpush1.bf16.xpose.msra.mxu0 %v218
    %319 = vmatprep.subr.bf16.mxu0 %v215
    %320 = vmatpush1.bf16.xpose.msra.mxu0 %v214
    %321 = vmatprep.subr.bf16.mxu0 %v211
    %322 = vmatpush1.bf16.xpose.msra.mxu0 %v210
    %323 = vmatprep.subr.bf16.mxu0 %v207
    %324 = vmatpush1.bf16.xpose.msra.mxu0 %v206
    %325 = vmatprep.subr.bf16.mxu0 %v203
    %326 = vmatpush1.bf16.xpose.msra.mxu0 %v202
    %327 = vmatprep.subr.bf16.mxu0 %v199
    %328 = vmatpush1.bf16.xpose.msra.mxu0 %v198
    %329 = vmatprep.subr.bf16.mxu0 %v259
    %330 = vmatpush2.bf16.xpose.msra.mxu0 %v258
    %331 = vmatprep.subr.bf16.mxu0 %v255
    %332 = vmatpush2.bf16.xpose.msra.mxu0 %v254
    %333 = vmatprep.subr.bf16.mxu0 %v251
    %334 = vmatpush2.bf16.xpose.msra.mxu0 %v250
    %335 = vmatprep.subr.bf16.mxu0 %v247
    %336 = vmatpush2.bf16.xpose.msra.mxu0 %v246
    %337 = vmatprep.subr.bf16.mxu0 %v243
    %338 = vmatpush2.bf16.xpose.msra.mxu0 %v242
    %339 = vmatprep.subr.bf16.mxu0 %v239
    %340 = vmatpush2.bf16.xpose.msra.mxu0 %v238
    %341 = vmatprep.subr.bf16.mxu0 %v235
    %342 = vmatpush2.bf16.xpose.msra.mxu0 %v234
    %343 = vmatprep.subr.bf16.mxu0 %v231
    %344 = vmatpush2.bf16.xpose.msra.mxu0 %v230
    %345 = vmatprep.mubr.bf16.mxu0 %v67
    %346 = vmatmul.mubr.bf16.gmra.mxu0 %v66
    %v347 = vpop.f32.mrf.mxu0
    %v348 = vadd.f32 %v307, %v347
    %v349 = vpop.f32.mrf.mxu0
    %v350 = vadd.f32 %v309, %v349
    %v351 = vpop.f32.mrf.mxu0
    %v352 = vpop.f32.mrf.mxu0
    %353 = vdwg.mxu0
    %v356 = vcombine.low %v348, %v350
    %v358 = vunpack.c.l.s4 1966171168
    %v359 = vunpack.c.0.s8 %v358
    %v360 = vlaneseq
    %v361 = vshrl.u32 %v360, 7
    %v362 = vsub.s32 %v359, %v361
    %v363 = vrot.slane %v356, %v362
    %v364 = vcombine.high %v363, %v363
    %v366 = vunpack.c.l.s4 1966171168
    %v367 = vunpack.c.0.s8 %v366
    %v368 = vlaneseq
    %v369 = vshrl.u32 %v368, 7
    %v370 = vsub.s32 %v367, %v369
    %v371 = vrot.slane %v363, %v370
    %v373 = vunpack.c.l.s4 1966171168
    %v374 = vunpack.c.0.s8 %v373
    %v375 = vlaneseq
    %v376 = vshrl.u32 %v375, 7
    %v377 = vsub.s32 %v374, %v376
    %v378 = vrot.slane %v364, %v377
    %v381 = vlaneseq
    %vm382 = vcmp.ge.s32.totalorder %v381, 0
    %vm383 = vcmp.lt.s32.totalorder %v381, 256
    %vm384 = vmand %vm382, %vm383
    %385 = vst.msk [vmem:[#allocation7] sm:$0x3] %vm384, %v371
    %386 = vst.msk [vmem:[#allocation7 + $0x2] sm:$0x3] %vm384, %v378
    // Predicated region
    $region22: #{tpu_custom_call.1} parent=1 // pred_check
      _
    $region23: #{tpu_custom_call.1} parent=1 // pred_check_branch
      %388 = sbr.rel (0) target = $region25
    $region24: #{tpu_custom_call.1} parent=1 // pred_region
      %s390 = ssub.s32 64, 64
      %391 = vsyncadd [#allocation4], %s390
      %s392 = sshll.u32 [#allocation7], 4
      %s393 = int_to_ptr.vmem [resolvable:$true] %s392
      %398 = dma.vmem_to_hbm [thread:$0]  %s393, 64, %s3, [#allocation4], 32, 32, 2
    $region25: #{tpu_custom_call.1} parent=1 // pred_fallthru
      _
    // Predicated region
    $region26: #{tpu_custom_call.1} parent=1 // pred_check
      _
    $region27: #{tpu_custom_call.1} parent=1 // pred_check_branch
      %400 = sbr.rel (0) target = $region29
    $region28: #{tpu_custom_call.1} parent=1 // pred_region
      %401 = dma.done [#allocation4], 64
    $region29: #{tpu_custom_call.1} parent=1 // pred_fallthru
      _
    %402 = vsyncpa [#allocation3], 1
    %403 = vsyncpa [#allocation6], 1
    %404 = vsyncpa [#allocation4], 1

</llo_original>
